<compile_context>
chip_gen: v7x
topology: tpu7x:2x2x1
jax: 0.10.0
libtpu: 0.0.40
codegen_flags: <defaults>
</compile_context>

<pallas_src>
import functools

import jax
import jax.numpy as jnp
from jax.experimental import pallas as pl
from jax.experimental.pallas import tpu as pltpu

LANES = 128
CHUNK_ROWS = 512            # 512*128*4 B = 256 KiB f32 per chunk temporary
MAX_CHUNKS_PER_BLOCK = 16   # -> up to 8192 rows = 4 MiB f32 per input per step


def _fscore_partial_kernel(pr_ref, gt_ref, out_ref, *, threshold, tile_rows,
                           chunk_rows, last_rows):
    """Writes per-block partial sums: out[0] = tp, out[1] = sum(pr_t), out[2] = sum(gt)."""
    thr = jnp.float32(threshold)

    def fold(x):
        # (chunk_rows,128) -> (8,128): tile-aligned reshape + pure VPU adds.
        return jnp.sum(x.reshape(-1, 8, LANES), axis=0)

    def chunk_sums(off, valid_rows=None):
        pr = pr_ref[pl.ds(off, chunk_rows), :].astype(jnp.float32)
        gt = gt_ref[pl.ds(off, chunk_rows), :].astype(jnp.float32)
        cmp = pr > thr
        if valid_rows is not None:
            # Only emitted for the single ragged chunk of the last grid block.
            row = jax.lax.broadcasted_iota(jnp.int32, (chunk_rows, LANES), 0)
            valid = row < valid_rows
            cmp = jnp.logical_and(cmp, valid)
            gt = jnp.where(valid, gt, 0.0)
        pr_t = cmp.astype(jnp.float32)        # thresholded predictions
        prod = jnp.where(cmp, gt, 0.0)        # gt * pr_t without the multiply
        return fold(prod), fold(pr_t), fold(gt)

    def process(rows_valid):
        n_full = rows_valid // chunk_rows
        rem = rows_valid - n_full * chunk_rows
        zero = jnp.zeros((8, LANES), jnp.float32)

        def body(c, carry):
            tp, sp, sg = carry
            dtp, dsp, dsg = chunk_sums(c * chunk_rows)
            return tp + dtp, sp + dsp, sg + dsg

        tp, sp, sg = jax.lax.fori_loop(0, n_full, body, (zero, zero, zero),
                                       unroll=True)
        if rem:
            dtp, dsp, dsg = chunk_sums(n_full * chunk_rows, valid_rows=rem)
            tp, sp, sg = tp + dtp, sp + dsp, sg + dsg

        out_ref[0, 0, :, :] = tp
        out_ref[0, 1, :, :] = sp
        out_ref[0, 2, :, :] = sg

    if last_rows == tile_rows:
        # Rows divide evenly into grid blocks: no iota / mask anywhere.
        process(tile_rows)
    else:
        i = pl.program_id(0)
        last = pl.num_programs(0) - 1

        @pl.when(i < last)
        def _():
            process(tile_rows)

        @pl.when(i == last)
        def _():
            process(last_rows)


def fscore_pallas(y_pr, y_gt, *, beta=1, eps=1e-07, threshold=0.5,
                  ignore_channels=None):
    """F-score over full tensors (NCHW), matching the PyTorch reference."""
    # TODO(synk): ignore_channels selection and the loss=='cross-entropy' argmax
    # preprocessing are not implemented (constructor defaults make both no-ops).
    assert ignore_channels is None
    assert y_pr.shape == y_gt.shape

    n = int(y_pr.size)
    flat_pr = y_pr.reshape(-1)
    flat_gt = y_gt.reshape(-1)

    rows = n // LANES
    use_pallas = rows >= 8
    full = rows * LANES if use_pallas else 0
    tail = n - full

    tp = jnp.float32(0.0)
    sp = jnp.float32(0.0)
    sg = jnp.float32(0.0)

    if use_pallas:
        if tail:
            pr2 = flat_pr[:full].reshape(rows, LANES)
            gt2 = flat_gt[:full].reshape(rows, LANES)
        else:
            pr2 = flat_pr.reshape(rows, LANES)
            gt2 = flat_gt.reshape(rows, LANES)

        # 8-aligned sub-chunk; streaming block = chunk * (#chunks), never
        # exceeding the array extent so every block shape stays legal.
        chunk_rows = min(CHUNK_ROWS, (rows // 8) * 8)
        n_chunks = min(MAX_CHUNKS_PER_BLOCK, rows // chunk_rows)
        tile_rows = chunk_rows * n_chunks
        num_blocks = (rows + tile_rows - 1) // tile_rows
        last_rows = rows - (num_blocks - 1) * tile_rows

        kernel = functools.partial(
            _fscore_partial_kernel, threshold=float(threshold),
            tile_rows=tile_rows, chunk_rows=chunk_rows, last_rows=last_rows)

        partials = pl.pallas_call(
            kernel,
            out_shape=jax.ShapeDtypeStruct((num_blocks, 3, 8, LANES),
                                           jnp.float32),
            grid_spec=pltpu.PrefetchScalarGridSpec(
                num_scalar_prefetch=0,
                grid=(num_blocks,),
                in_specs=[
                    pl.BlockSpec((tile_rows, LANES), lambda i: (i, 0)),
                    pl.BlockSpec((tile_rows, LANES), lambda i: (i, 0)),
                ],
                out_specs=pl.BlockSpec((1, 3, 8, LANES),
                                       lambda i: (i, 0, 0, 0)),
            ),
            compiler_params=pltpu.CompilerParams(
                dimension_semantics=("parallel",),
                vmem_limit_bytes=32 * 1024 * 1024),
        )(pr2, gt2)

        sums = jnp.sum(partials, axis=(0, 2, 3))   # tiny (3,) reduction in JAX
        tp, sp, sg = sums[0], sums[1], sums[2]

    if tail:
        # Ragged (<128-element) tail handled in plain JAX; no full-tensor pad.
        pr_tail = flat_pr[full:].astype(jnp.float32)
        gt_tail = flat_gt[full:].astype(jnp.float32)
        pr_t_tail = (pr_tail > jnp.float32(threshold)).astype(jnp.float32)
        tp = tp + jnp.sum(gt_tail * pr_t_tail)
        sp = sp + jnp.sum(pr_t_tail)
        sg = sg + jnp.sum(gt_tail)

    fp = sp - tp
    fn = sg - tp
    b2 = jnp.float32(float(beta) ** 2)
    e = jnp.float32(eps)
    return ((1.0 + b2) * tp + e) / ((1.0 + b2) * tp + b2 * fn + fp + e)


def fscore_reference(y_pr, y_gt, *, beta=1, eps=1e-07, threshold=0.5):
    pr = (y_pr > threshold).astype(jnp.float32)
    gt = y_gt.astype(jnp.float32)
    tp = jnp.sum(gt * pr)
    fp = jnp.sum(pr) - tp
    fn = jnp.sum(gt) - tp
    b2 = beta ** 2
    return ((1 + b2) * tp + eps) / ((1 + b2) * tp + b2 * fn + fp + eps)


if __name__ == "__main__":
    key = jax.random.PRNGKey(0)
    k1, k2, k3, k4 = jax.random.split(key, 4)

    # Main case: NCHW, divides evenly into lanes (fully unmasked fast path).
    y_pr = jax.random.uniform(k1, (2, 4, 16, 16), dtype=jnp.float32)
    y_gt = (jax.random.uniform(k2, (2, 4, 16, 16)) > 0.5).astype(jnp.float32)
    score = jax.block_until_ready(fscore_pallas(y_pr, y_gt))
    ref = fscore_reference(y_pr, y_gt)
    assert jnp.allclose(score, ref, rtol=1e-5, atol=1e-6), (score, ref)

    # Ragged case: exercises the masked last block + plain-JAX lane tail.
    y_pr2 = jax.random.uniform(k3, (2, 3, 17, 19), dtype=jnp.float32)
    y_gt2 = (jax.random.uniform(k4, (2, 3, 17, 19)) > 0.5).astype(jnp.float32)
    score2 = jax.block_until_ready(fscore_pallas(y_pr2, y_gt2))
    ref2 = fscore_reference(y_pr2, y_gt2)
    assert jnp.allclose(score2, ref2, rtol=1e-5, atol=1e-6), (score2, ref2)

    print("KERNEL_OK")
</pallas_src>

<mosaic_0001>
module attributes {stable_mosaic.version = 11 : i64} {
  func.func @_fscore_partial_kernel(%arg0: i32, %arg1: memref<16x128xf32, #tpu.memory_space<vmem>>, %arg2: memref<16x128xf32, #tpu.memory_space<vmem>>, %arg3: memref<1x3x8x128xf32, #tpu.memory_space<vmem>>) attributes {dimension_semantics = [#tpu.dimension_semantics<parallel>], iteration_bounds = array<i64: 1>, scalar_prefetch = 0 : i64, scratch_operands = 0 : i64, tpu.core_type = #tpu.core_type<tc>, window_params = [{transform_indices = @transform_0, window_bounds = array<i64: 16, 128>}, {transform_indices = @transform_1, window_bounds = array<i64: 16, 128>}, {transform_indices = @transform_2, window_bounds = array<i64: 1, 3, 8, 128>}]} {
    %cst = arith.constant 0.000000e+00 : f32
    %0 = vector.broadcast %cst : f32 to vector<8x128xf32>
    %cst_0 = arith.constant 5.000000e-01 : f32
    %c0_i32 = arith.constant 0 : i32
    %c16_i32 = arith.constant 16 : i32
    %1 = arith.muli %c0_i32, %c16_i32 : i32
    %2 = arith.index_cast %1 : i32 to index
    %c0 = arith.constant 0 : index
    %3 = vector.load %arg1[%2, %c0] : memref<16x128xf32, #tpu.memory_space<vmem>>, vector<16x128xf32>
    %4 = arith.index_cast %1 : i32 to index
    %c0_1 = arith.constant 0 : index
    %5 = vector.load %arg2[%4, %c0_1] : memref<16x128xf32, #tpu.memory_space<vmem>>, vector<16x128xf32>
    %6 = vector.broadcast %cst_0 : f32 to vector<16x128xf32>
    %7 = arith.cmpf ogt, %3, %6 : vector<16x128xf32>
    %8 = arith.extui %7 : vector<16x128xi1> to vector<16x128xi32>
    %9 = arith.sitofp %8 : vector<16x128xi32> to vector<16x128xf32>
    %cst_2 = arith.constant 0.000000e+00 : f32
    %10 = vector.broadcast %cst_2 : f32 to vector<16x128xf32>
    %11 = arith.select %7, %5, %10 : vector<16x128xi1>, vector<16x128xf32>
    %12 = vector.shape_cast %11 : vector<16x128xf32> to vector<2x8x128xf32>
    %cst_3 = arith.constant dense<0.000000e+00> : vector<8x128xf32>
    %13 = vector.multi_reduction <add>, %12, %cst_3 [0] : vector<2x8x128xf32> to vector<8x128xf32>
    %14 = vector.shape_cast %9 : vector<16x128xf32> to vector<2x8x128xf32>
    %cst_4 = arith.constant dense<0.000000e+00> : vector<8x128xf32>
    %15 = vector.multi_reduction <add>, %14, %cst_4 [0] : vector<2x8x128xf32> to vector<8x128xf32>
    %16 = vector.shape_cast %5 : vector<16x128xf32> to vector<2x8x128xf32>
    %cst_5 = arith.constant dense<0.000000e+00> : vector<8x128xf32>
    %17 = vector.multi_reduction <add>, %16, %cst_5 [0] : vector<2x8x128xf32> to vector<8x128xf32>
    %18 = arith.addf %0, %13 : vector<8x128xf32>
    %19 = arith.addf %0, %15 : vector<8x128xf32>
    %20 = arith.addf %0, %17 : vector<8x128xf32>
    %c1_i32 = arith.constant 1 : i32
    %c0_6 = arith.constant 0 : index
    %c0_7 = arith.constant 0 : index
    %c0_8 = arith.constant 0 : index
    %c0_9 = arith.constant 0 : index
    %21 = vector.load %arg3[%c0_6, %c0_7, %c0_8, %c0_9] : memref<1x3x8x128xf32, #tpu.memory_space<vmem>>, vector<1x1x8x128xf32>
    %22 = vector.shape_cast %21 : vector<1x1x8x128xf32> to vector<8x128xf32>
    %23 = vector.shape_cast %18 : vector<8x128xf32> to vector<1x1x8x128xf32>
    tpu.vector_store %arg3[%c0_6, %c0_7, %c0_8, %c0_9], %23 {strides = array<i32>} : memref<1x3x8x128xf32, #tpu.memory_space<vmem>>, vector<1x1x8x128xf32>,
    %c0_10 = arith.constant 0 : index
    %c1 = arith.constant 1 : index
    %c0_11 = arith.constant 0 : index
    %c0_12 = arith.constant 0 : index
    %24 = vector.load %arg3[%c0_10, %c1, %c0_11, %c0_12] : memref<1x3x8x128xf32, #tpu.memory_space<vmem>>, vector<1x1x8x128xf32>
    %25 = vector.shape_cast %24 : vector<1x1x8x128xf32> to vector<8x128xf32>
    %26 = vector.shape_cast %19 : vector<8x128xf32> to vector<1x1x8x128xf32>
    tpu.vector_store %arg3[%c0_10, %c1, %c0_11, %c0_12], %26 {strides = array<i32>} : memref<1x3x8x128xf32, #tpu.memory_space<vmem>>, vector<1x1x8x128xf32>,
    %c0_13 = arith.constant 0 : index
    %c2 = arith.constant 2 : index
    %c0_14 = arith.constant 0 : index
    %c0_15 = arith.constant 0 : index
    %27 = vector.load %arg3[%c0_13, %c2, %c0_14, %c0_15] : memref<1x3x8x128xf32, #tpu.memory_space<vmem>>, vector<1x1x8x128xf32>
    %28 = vector.shape_cast %27 : vector<1x1x8x128xf32> to vector<8x128xf32>
    %29 = vector.shape_cast %20 : vector<8x128xf32> to vector<1x1x8x128xf32>
    tpu.vector_store %arg3[%c0_13, %c2, %c0_14, %c0_15], %29 {strides = array<i32>} : memref<1x3x8x128xf32, #tpu.memory_space<vmem>>, vector<1x1x8x128xf32>,
    return
  }
  func.func @transform_0(%arg0: i32) -> (i32, i32) {
    %c0_i32 = arith.constant 0 : i32
    %c0_i32_0 = arith.constant 0 : i32
    return %arg0, %c0_i32 : i32, i32
  }
  func.func @transform_1(%arg0: i32) -> (i32, i32) {
    %c0_i32 = arith.constant 0 : i32
    %c0_i32_0 = arith.constant 0 : i32
    return %arg0, %c0_i32 : i32, i32
  }
  func.func @transform_2(%arg0: i32) -> (i32, i32, i32, i32) {
    %c0_i32 = arith.constant 0 : i32
    %c0_i32_0 = arith.constant 0 : i32
    %c0_i32_1 = arith.constant 0 : i32
    %c0_i32_2 = arith.constant 0 : i32
    return %arg0, %c0_i32, %c0_i32_0, %c0_i32_1 : i32, i32, i32, i32
  }
}

</mosaic_0001>

<llo_original>
// kernel: tpu_custom_call.1
$region0: #{tpu_custom_call.1}
  #allocation0 [shape = 'u32[]', space=smem, size = 0x4, offset = 0x4, fixed_abs, tag = 'smem constant byte address 0x4 - core index']
  #allocation1 [shape = 'u32[144,128]{1,0:T(1,128)}', space=vmem, size = 0x12000, scoped, tag = 'internal scratch']
  %s0 = inlined_call_operand.hbm [shape: f32[16,128], index: 0, kind: input, shape index: {}]
  %s1 = inlined_call_operand.hbm [shape: f32[16,128], index: 1, kind: input, shape index: {}]
  %s2 = inlined_call_operand.hbm [shape: f32[1,3,8,128], index: 2, kind: output, shape index: {}]
  %s3 = sld [smem:[#allocation0]]
  $region26: #{tpu_custom_call.1} parent=0
    _
  %s5 = ssub.s32 1, %s3
  %s6 = scalar_select 0, %s5, %s3
  $region1: #{tpu_custom_call.1} parent=0
    #allocation2 [shape = 'u8[8192]{0}', space=vmem, size = 0x2000, scoped, tag = 'input window, operand 0, single buffered']
    #allocation3 [shape = 's32[1]{0}', space=sflag, size = 0x4, scoped, tag = 'scoped memory for tpu_custom_call.1']
    #allocation4 [shape = 's32[1]{0}', space=sflag, size = 0x4, scoped, tag = 'scoped memory for tpu_custom_call.1']
    #allocation5 [shape = 'u8[8192]{0}', space=vmem, size = 0x2000, scoped, tag = 'input window, operand 1, single buffered']
    #allocation6 [shape = 's32[1]{0}', space=sflag, size = 0x4, scoped, tag = 'scoped memory for tpu_custom_call.1']
    #allocation7 [shape = 'u8[12288]{0}', space=vmem, size = 0x3000, scoped, tag = 'output window, operand 0, single buffered']
    %7 = vsyncpa [#allocation3], 0
    %8 = vsyncpa [#allocation6], 0
    %9 = vsyncpa [#allocation4], 0
    // Predicated region
    $region2: #{tpu_custom_call.1} parent=1 // pred_check
      _
    $region3: #{tpu_custom_call.1} parent=1 // pred_check_branch
      %11 = sbr.rel (0) target = $region5
    $region4: #{tpu_custom_call.1} parent=1 // pred_region
      %s13 = ssub.s32 256, 256
      %14 = vsyncadd [#allocation3], %s13
      %s15 = sshll.u32 [#allocation2], 4
      %s16 = int_to_ptr.vmem [resolvable:$true] %s15
      %21 = dma.hbm_to_vmem [thread:$0]  %s0, 256, %s16, [#allocation3], 128, 128, 8
    $region5: #{tpu_custom_call.1} parent=1 // pred_fallthru
      _
    // Predicated region
    $region6: #{tpu_custom_call.1} parent=1 // pred_check
      _
    $region7: #{tpu_custom_call.1} parent=1 // pred_check_branch
      %23 = sbr.rel (0) target = $region9
    $region8: #{tpu_custom_call.1} parent=1 // pred_region
      %s25 = ssub.s32 256, 256
      %26 = vsyncadd [#allocation6], %s25
      %s27 = sshll.u32 [#allocation5], 4
      %s28 = int_to_ptr.vmem [resolvable:$true] %s27
      %33 = dma.hbm_to_vmem [thread:$0]  %s1, 256, %s28, [#allocation6], 128, 128, 8
    $region9: #{tpu_custom_call.1} parent=1 // pred_fallthru
      _
    // Predicated region
    $region10: #{tpu_custom_call.1} parent=1 // pred_check
      _
    $region11: #{tpu_custom_call.1} parent=1 // pred_check_branch
      %35 = sbr.rel (0) target = $region13
    $region12: #{tpu_custom_call.1} parent=1 // pred_region
      %36 = dma.done [#allocation3], 256
    $region13: #{tpu_custom_call.1} parent=1 // pred_fallthru
      _
    // Predicated region
    $region14: #{tpu_custom_call.1} parent=1 // pred_check
      _
    $region15: #{tpu_custom_call.1} parent=1 // pred_check_branch
      %38 = sbr.rel (0) target = $region17
    $region16: #{tpu_custom_call.1} parent=1 // pred_region
      %39 = dma.done [#allocation6], 256
    $region17: #{tpu_custom_call.1} parent=1 // pred_fallthru
      _
    %v40 = vld [vmem:[#allocation2] sm:$0xff]
    %v41 = vld [vmem:[#allocation2 + $0x8] sm:$0xff]
    %v42 = vld [vmem:[#allocation5] sm:$0xff]
    %v43 = vld [vmem:[#allocation5 + $0x8] sm:$0xff]
    %vm44 = vcmp.gt.f32.partialorder %v40, 0.5
    %vm45 = vcmp.gt.f32.partialorder %v41, 0.5
    %v46 = vsel %vm44, 1, 0
    %v47 = vsel %vm45, 1, 0
    %v48 = vcvt.s32.f32 %v46
    %v49 = vcvt.s32.f32 %v47
    %v50 = vsel %vm44, %v42, 0.0
    %v51 = vsel %vm45, %v43, 0.0
    %v52 = vadd.f32 %v50, %v51
    %v53 = vadd.f32 %v48, %v49
    %v54 = vadd.f32 %v42, %v43
    %v55 = vadd.f32 %v52, 0.0
    %v56 = vadd.f32 %v53, 0.0
    %v57 = vadd.f32 %v54, 0.0
    %58 = vst [vmem:[#allocation7] sm:$0xff] %v55
    %s59 = scalar_lea.vmem [#allocation7], 8
    %60 = vst [vmem:[%s59] sm:$0xff] %v56
    %s61 = scalar_lea.vmem [#allocation7], 16
    %62 = vst [vmem:[%s61] sm:$0xff] %v57
    // Predicated region
    $region18: #{tpu_custom_call.1} parent=1 // pred_check
      _
    $region19: #{tpu_custom_call.1} parent=1 // pred_check_branch
      %64 = sbr.rel (0) target = $region21
    $region20: #{tpu_custom_call.1} parent=1 // pred_region
      %s66 = ssub.s32 384, 384
      %67 = vsyncadd [#allocation4], %s66
      %s68 = sshll.u32 [#allocation7], 4
      %s69 = int_to_ptr.vmem [resolvable:$true] %s68
      %74 = dma.vmem_to_hbm [thread:$0]  %s69, 384, %s2, [#allocation4], 128, 128, 8
    $region21: #{tpu_custom_call.1} parent=1 // pred_fallthru
      _
    // Predicated region
    $region22: #{tpu_custom_call.1} parent=1 // pred_check
      _
    $region23: #{tpu_custom_call.1} parent=1 // pred_check_branch
      %76 = sbr.rel (0) target = $region25
    $region24: #{tpu_custom_call.1} parent=1 // pred_region
      %77 = dma.done [#allocation4], 384
    $region25: #{tpu_custom_call.1} parent=1 // pred_fallthru
      _
    %78 = vsyncpa [#allocation3], 1
    %79 = vsyncpa [#allocation6], 1
    %80 = vsyncpa [#allocation4], 1

</llo_original>
